<compile_context>
chip_gen: v5e
topology: v5e:2x2
jax: 0.10.0
libtpu: 0.0.40
codegen_flags: <defaults>
</compile_context>

<pallas_src>
import jax
import jax.numpy as jnp
from jax.experimental import pallas as pl
from jax.experimental.pallas import tpu as pltpu

LANE = 128


def _round_up(x, m):
    return (x + m - 1) // m * m


def actor_mlp_kernel(x_ref,
                     w1_ref, b1_ref,
                     w2_ref, b2_ref,
                     w3_ref, b3_ref,
                     w4_ref, b4_ref,
                     mean_ref):
    """One batch tile of the 4-layer MLP. bf16 operands, f32 accumulation."""
    h = jnp.dot(x_ref[...], w1_ref[...],
                preferred_element_type=jnp.float32) + b1_ref[...]
    h = jnp.maximum(h, 0.0).astype(jnp.bfloat16)

    h = jnp.dot(h, w2_ref[...],
                preferred_element_type=jnp.float32) + b2_ref[...]
    h = jnp.maximum(h, 0.0).astype(jnp.bfloat16)

    h = jnp.dot(h, w3_ref[...],
                preferred_element_type=jnp.float32) + b3_ref[...]
    h = jnp.maximum(h, 0.0).astype(jnp.bfloat16)

    mean = jnp.dot(h, w4_ref[...],
                   preferred_element_type=jnp.float32) + b4_ref[...]
    mean_ref[...] = mean.astype(mean_ref.dtype)


def actor_forward(state, params):
    """state: (B, obs_dim) f32. params: dict of f32 weights. Returns (mean, std)."""
    B, obs_dim = state.shape
    hidden = params["w1"].shape[1]
    action_dim = params["log_std"].shape[1]

    # ---- lane-dense padding of the final layer (action_dim -> multiple of 128)
    n_pad = _round_up(action_dim, LANE)
    w4 = params["w4"]
    b4 = params["b4"]
    if w4.shape[1] != n_pad:
        w4 = jnp.pad(w4, ((0, 0), (0, n_pad - w4.shape[1])))
        b4 = jnp.pad(b4, ((0, 0), (0, n_pad - b4.shape[1])))

    # ---- batch tiling: TB rows per grid step (multiple of 16 for bf16 sublanes)
    tb = min(256, _round_up(B, 16))
    b_pad = _round_up(B, tb)
    x = state.astype(jnp.bfloat16)
    if b_pad != B:
        x = jnp.pad(x, ((0, b_pad - B), (0, 0)))

    grid = (b_pad // tb,)

    in_arrays = (
        x,
        params["w1"].astype(jnp.bfloat16), params["b1"],
        params["w2"].astype(jnp.bfloat16), params["b2"],
        params["w3"].astype(jnp.bfloat16), params["b3"],
        w4.astype(jnp.bfloat16), b4,
    )

    # Weights / biases: full block at constant block index -> stay VMEM-resident.
    def resident(a):
        return pl.BlockSpec(a.shape, lambda i: (0, 0))

    in_specs = [pl.BlockSpec((tb, obs_dim), lambda i: (i, 0))]
    in_specs += [resident(a) for a in in_arrays[1:]]

    flops = 2 * b_pad * (obs_dim * hidden + 2 * hidden * hidden + hidden * n_pad)
    bytes_accessed = (
        int(x.size) * 2
        + sum(int(a.size) * a.dtype.itemsize for a in in_arrays[1:])
        + b_pad * n_pad * 4
    )

    mean_padded = pl.pallas_call(
        actor_mlp_kernel,
        out_shape=jax.ShapeDtypeStruct((b_pad, n_pad), jnp.float32),
        grid=grid,
        in_specs=in_specs,
        out_specs=pl.BlockSpec((tb, n_pad), lambda i: (i, 0)),
        compiler_params=pltpu.CompilerParams(
            dimension_semantics=("parallel",),
            vmem_limit_bytes=16 << 20,
        ),
        cost_estimate=pl.CostEstimate(
            flops=flops, transcendentals=0, bytes_accessed=bytes_accessed),
    )(*in_arrays)

    mean = mean_padded[:B, :action_dim]
    # std depends only on params, not state: compute once outside the kernel.
    std = jnp.exp(params["log_std"])
    return mean, std


def init_actor_params(key, obs_dim, action_dim, hidden_size=256, std=-0.5):
    """Deterministic synthetic init (PyTorch-Linear-style uniform bounds).

    Weights stored as (in, out) so the kernel computes x @ W + b
    (equivalent to PyTorch's x @ W.T + b with W_torch = W.T).
    """
    keys = jax.random.split(key, 8)

    def linear(kw, kb, fan_in, fan_out):
        bound = 1.0 / jnp.sqrt(jnp.float32(fan_in))
        w = jax.random.uniform(kw, (fan_in, fan_out), jnp.float32, -bound, bound)
        b = jax.random.uniform(kb, (1, fan_out), jnp.float32, -bound, bound)
        return w, b

    w1, b1 = linear(keys[0], keys[1], obs_dim, hidden_size)
    w2, b2 = linear(keys[2], keys[3], hidden_size, hidden_size)
    w3, b3 = linear(keys[4], keys[5], hidden_size, hidden_size)
    w4, b4 = linear(keys[6], keys[7], hidden_size, action_dim)
    log_std = jnp.ones((1, action_dim), jnp.float32) * std

    return dict(w1=w1, b1=b1, w2=w2, b2=b2, w3=w3, b3=b3, w4=w4, b4=b4,
                log_std=log_std)


def actor_forward_ref(state, p):
    """Pure-JAX reference mirroring the kernel's bf16-operand / f32-acc math."""
    bf = jnp.bfloat16
    h = jnp.maximum(jnp.dot(state.astype(bf), p["w1"].astype(bf),
                            preferred_element_type=jnp.float32) + p["b1"], 0.0)
    h = jnp.maximum(jnp.dot(h.astype(bf), p["w2"].astype(bf),
                            preferred_element_type=jnp.float32) + p["b2"], 0.0)
    h = jnp.maximum(jnp.dot(h.astype(bf), p["w3"].astype(bf),
                            preferred_element_type=jnp.float32) + p["b3"], 0.0)
    mean = jnp.dot(h.astype(bf), p["w4"].astype(bf),
                   preferred_element_type=jnp.float32) + p["b4"]
    std = jnp.exp(p["log_std"])
    return mean, std


if __name__ == "__main__":
    key = jax.random.PRNGKey(0)
    k_param, k_state = jax.random.split(key)

    # Small shapes consistent with the module (hidden uses the module default).
    B, obs_dim, action_dim, hidden = 8, 16, 8, 256
    params = init_actor_params(k_param, obs_dim, action_dim,
                               hidden_size=hidden, std=-0.5)
    state = jax.random.normal(k_state, (B, obs_dim), jnp.float32)

    fwd = jax.jit(actor_forward)
    mean, std = fwd(state, params)
    mean, std = jax.block_until_ready((mean, std))

    mean_ref, std_ref = actor_forward_ref(state, params)
    assert mean.shape == (B, action_dim) and std.shape == (1, action_dim)
    assert jnp.allclose(mean, mean_ref, atol=2e-2, rtol=2e-2), \
        float(jnp.max(jnp.abs(mean - mean_ref)))
    assert jnp.allclose(std, std_ref, atol=1e-6, rtol=1e-6)

    # TODO(synk): Actor.sample() (tanh-squashed Normal rsample + log_prob) is
    # host-side distribution logic, not part of forward(); not ported here.
    print("KERNEL_OK")
</pallas_src>

<mosaic_0001>
module attributes {stable_mosaic.version = 11 : i64} {
  func.func @actor_mlp_kernel(%arg0: i32, %arg1: memref<16x16xbf16, #tpu.memory_space<vmem>>, %arg2: memref<16x256xbf16, #tpu.memory_space<vmem>>, %arg3: memref<1x256xf32, #tpu.memory_space<vmem>>, %arg4: memref<256x256xbf16, #tpu.memory_space<vmem>>, %arg5: memref<1x256xf32, #tpu.memory_space<vmem>>, %arg6: memref<256x256xbf16, #tpu.memory_space<vmem>>, %arg7: memref<1x256xf32, #tpu.memory_space<vmem>>, %arg8: memref<256x128xbf16, #tpu.memory_space<vmem>>, %arg9: memref<1x128xf32, #tpu.memory_space<vmem>>, %arg10: memref<16x128xf32, #tpu.memory_space<vmem>>) attributes {dimension_semantics = [#tpu.dimension_semantics<parallel>], iteration_bounds = array<i64: 1>, scalar_prefetch = 0 : i64, scratch_operands = 0 : i64, tpu.core_type = #tpu.core_type<tc>, window_params = [{transform_indices = @transform_0, window_bounds = array<i64: 16, 16>}, {pipeline_mode = #tpu.pipeline_mode<synchronous>, transform_indices = @transform_1, window_bounds = array<i64: 16, 256>}, {pipeline_mode = #tpu.pipeline_mode<synchronous>, transform_indices = @transform_2, window_bounds = array<i64: 1, 256>}, {pipeline_mode = #tpu.pipeline_mode<synchronous>, transform_indices = @transform_3, window_bounds = array<i64: 256, 256>}, {pipeline_mode = #tpu.pipeline_mode<synchronous>, transform_indices = @transform_4, window_bounds = array<i64: 1, 256>}, {pipeline_mode = #tpu.pipeline_mode<synchronous>, transform_indices = @transform_5, window_bounds = array<i64: 256, 256>}, {pipeline_mode = #tpu.pipeline_mode<synchronous>, transform_indices = @transform_6, window_bounds = array<i64: 1, 256>}, {pipeline_mode = #tpu.pipeline_mode<synchronous>, transform_indices = @transform_7, window_bounds = array<i64: 256, 128>}, {pipeline_mode = #tpu.pipeline_mode<synchronous>, transform_indices = @transform_8, window_bounds = array<i64: 1, 128>}, {transform_indices = @transform_9, window_bounds = array<i64: 16, 128>}]} {
    %c0 = arith.constant 0 : index
    %c0_0 = arith.constant 0 : index
    %0 = vector.load %arg1[%c0, %c0_0] : memref<16x16xbf16, #tpu.memory_space<vmem>>, vector<16x16xbf16>
    %c0_1 = arith.constant 0 : index
    %c0_2 = arith.constant 0 : index
    %1 = vector.load %arg2[%c0_1, %c0_2] : memref<16x256xbf16, #tpu.memory_space<vmem>>, vector<16x256xbf16>
    %cst = arith.constant dense<0.000000e+00> : vector<16x256xf32>
    %2 = tpu.matmul %0, %1, %cst {dimension_numbers = #tpu.dot_dimension_numbers<[1], [0], [0], [1], [0, 0, 1, 1], [], []>} : vector<16x16xbf16>, vector<16x256xbf16>, vector<16x256xf32> -> vector<16x256xf32>
    %c0_3 = arith.constant 0 : index
    %c0_4 = arith.constant 0 : index
    %3 = vector.load %arg3[%c0_3, %c0_4] : memref<1x256xf32, #tpu.memory_space<vmem>>, vector<1x256xf32>
    %4 = vector.broadcast %3 : vector<1x256xf32> to vector<16x256xf32>
    %5 = arith.addf %2, %4 : vector<16x256xf32>
    %cst_5 = arith.constant 0.000000e+00 : f32
    %6 = vector.broadcast %cst_5 : f32 to vector<16x256xf32>
    %7 = arith.maximumf %5, %6 : vector<16x256xf32>
    %8 = arith.truncf %7 : vector<16x256xf32> to vector<16x256xbf16>
    %c0_6 = arith.constant 0 : index
    %c0_7 = arith.constant 0 : index
    %9 = vector.load %arg4[%c0_6, %c0_7] : memref<256x256xbf16, #tpu.memory_space<vmem>>, vector<256x256xbf16>
    %cst_8 = arith.constant dense<0.000000e+00> : vector<16x256xf32>
    %10 = tpu.matmul %8, %9, %cst_8 {dimension_numbers = #tpu.dot_dimension_numbers<[1], [0], [0], [1], [0, 0, 1, 1], [], []>} : vector<16x256xbf16>, vector<256x256xbf16>, vector<16x256xf32> -> vector<16x256xf32>
    %c0_9 = arith.constant 0 : index
    %c0_10 = arith.constant 0 : index
    %11 = vector.load %arg5[%c0_9, %c0_10] : memref<1x256xf32, #tpu.memory_space<vmem>>, vector<1x256xf32>
    %12 = vector.broadcast %11 : vector<1x256xf32> to vector<16x256xf32>
    %13 = arith.addf %10, %12 : vector<16x256xf32>
    %cst_11 = arith.constant 0.000000e+00 : f32
    %14 = vector.broadcast %cst_11 : f32 to vector<16x256xf32>
    %15 = arith.maximumf %13, %14 : vector<16x256xf32>
    %16 = arith.truncf %15 : vector<16x256xf32> to vector<16x256xbf16>
    %c0_12 = arith.constant 0 : index
    %c0_13 = arith.constant 0 : index
    %17 = vector.load %arg6[%c0_12, %c0_13] : memref<256x256xbf16, #tpu.memory_space<vmem>>, vector<256x256xbf16>
    %cst_14 = arith.constant dense<0.000000e+00> : vector<16x256xf32>
    %18 = tpu.matmul %16, %17, %cst_14 {dimension_numbers = #tpu.dot_dimension_numbers<[1], [0], [0], [1], [0, 0, 1, 1], [], []>} : vector<16x256xbf16>, vector<256x256xbf16>, vector<16x256xf32> -> vector<16x256xf32>
    %c0_15 = arith.constant 0 : index
    %c0_16 = arith.constant 0 : index
    %19 = vector.load %arg7[%c0_15, %c0_16] : memref<1x256xf32, #tpu.memory_space<vmem>>, vector<1x256xf32>
    %20 = vector.broadcast %19 : vector<1x256xf32> to vector<16x256xf32>
    %21 = arith.addf %18, %20 : vector<16x256xf32>
    %cst_17 = arith.constant 0.000000e+00 : f32
    %22 = vector.broadcast %cst_17 : f32 to vector<16x256xf32>
    %23 = arith.maximumf %21, %22 : vector<16x256xf32>
    %24 = arith.truncf %23 : vector<16x256xf32> to vector<16x256xbf16>
    %c0_18 = arith.constant 0 : index
    %c0_19 = arith.constant 0 : index
    %25 = vector.load %arg8[%c0_18, %c0_19] : memref<256x128xbf16, #tpu.memory_space<vmem>>, vector<256x128xbf16>
    %cst_20 = arith.constant dense<0.000000e+00> : vector<16x128xf32>
    %26 = tpu.matmul %24, %25, %cst_20 {dimension_numbers = #tpu.dot_dimension_numbers<[1], [0], [0], [1], [0, 0, 1, 1], [], []>} : vector<16x256xbf16>, vector<256x128xbf16>, vector<16x128xf32> -> vector<16x128xf32>
    %c0_21 = arith.constant 0 : index
    %c0_22 = arith.constant 0 : index
    %27 = vector.load %arg9[%c0_21, %c0_22] : memref<1x128xf32, #tpu.memory_space<vmem>>, vector<1x128xf32>
    %28 = vector.broadcast %27 : vector<1x128xf32> to vector<16x128xf32>
    %29 = arith.addf %26, %28 : vector<16x128xf32>
    %c0_23 = arith.constant 0 : index
    %c0_24 = arith.constant 0 : index
    %30 = vector.load %arg10[%c0_23, %c0_24] : memref<16x128xf32, #tpu.memory_space<vmem>>, vector<16x128xf32>
    tpu.vector_store %arg10[%c0_23, %c0_24], %29 {strides = array<i32>} : memref<16x128xf32, #tpu.memory_space<vmem>>, vector<16x128xf32>,
    return
  }
  func.func @transform_0(%arg0: i32) -> (i32, i32) {
    %c0_i32 = arith.constant 0 : i32
    %c0_i32_0 = arith.constant 0 : i32
    return %arg0, %c0_i32 : i32, i32
  }
  func.func @transform_1(%arg0: i32) -> (i32, i32) {
    %c0_i32 = arith.constant 0 : i32
    %c0_i32_0 = arith.constant 0 : i32
    %c0_i32_1 = arith.constant 0 : i32
    return %c0_i32, %c0_i32_0 : i32, i32
  }
  func.func @transform_2(%arg0: i32) -> (i32, i32) {
    %c0_i32 = arith.constant 0 : i32
    %c0_i32_0 = arith.constant 0 : i32
    %c0_i32_1 = arith.constant 0 : i32
    return %c0_i32, %c0_i32_0 : i32, i32
  }
  func.func @transform_3(%arg0: i32) -> (i32, i32) {
    %c0_i32 = arith.constant 0 : i32
    %c0_i32_0 = arith.constant 0 : i32
    %c0_i32_1 = arith.constant 0 : i32
    return %c0_i32, %c0_i32_0 : i32, i32
  }
  func.func @transform_4(%arg0: i32) -> (i32, i32) {
    %c0_i32 = arith.constant 0 : i32
    %c0_i32_0 = arith.constant 0 : i32
    %c0_i32_1 = arith.constant 0 : i32
    return %c0_i32, %c0_i32_0 : i32, i32
  }
  func.func @transform_5(%arg0: i32) -> (i32, i32) {
    %c0_i32 = arith.constant 0 : i32
    %c0_i32_0 = arith.constant 0 : i32
    %c0_i32_1 = arith.constant 0 : i32
    return %c0_i32, %c0_i32_0 : i32, i32
  }
  func.func @transform_6(%arg0: i32) -> (i32, i32) {
    %c0_i32 = arith.constant 0 : i32
    %c0_i32_0 = arith.constant 0 : i32
    %c0_i32_1 = arith.constant 0 : i32
    return %c0_i32, %c0_i32_0 : i32, i32
  }
  func.func @transform_7(%arg0: i32) -> (i32, i32) {
    %c0_i32 = arith.constant 0 : i32
    %c0_i32_0 = arith.constant 0 : i32
    %c0_i32_1 = arith.constant 0 : i32
    return %c0_i32, %c0_i32_0 : i32, i32
  }
  func.func @transform_8(%arg0: i32) -> (i32, i32) {
    %c0_i32 = arith.constant 0 : i32
    %c0_i32_0 = arith.constant 0 : i32
    %c0_i32_1 = arith.constant 0 : i32
    return %c0_i32, %c0_i32_0 : i32, i32
  }
  func.func @transform_9(%arg0: i32) -> (i32, i32) {
    %c0_i32 = arith.constant 0 : i32
    %c0_i32_0 = arith.constant 0 : i32
    return %arg0, %c0_i32 : i32, i32
  }
}

</mosaic_0001>

<llo_original>
// kernel: actor_forward.1
$region0: #{actor_forward.1}
  #allocation0 [shape = 'u32[]', space=smem, size = 0x4, offset = 0x4, fixed_abs, tag = 'smem constant byte address 0x4 - core index']
  #allocation1 [shape = 'u32[72,128]{1,0:T(1,128)}', space=vmem, size = 0x9000, scoped, tag = 'internal scratch']
  %s0 = inlined_call_operand.vmem [shape: bf16[16,16], index: 0, kind: input, shape index: {}]
  %s1 = inlined_call_operand.vmem [shape: bf16[16,256], index: 1, kind: input, shape index: {}]
  %s2 = inlined_call_operand.vmem [shape: f32[1,256], index: 2, kind: input, shape index: {}]
  %s3 = inlined_call_operand.vmem [shape: bf16[256,256], index: 3, kind: input, shape index: {}]
  %s4 = inlined_call_operand.vmem [shape: f32[1,256], index: 4, kind: input, shape index: {}]
  %s5 = inlined_call_operand.vmem [shape: bf16[256,256], index: 5, kind: input, shape index: {}]
  %s6 = inlined_call_operand.vmem [shape: f32[1,256], index: 6, kind: input, shape index: {}]
  %s7 = inlined_call_operand.vmem [shape: bf16[256,128], index: 7, kind: input, shape index: {}]
  %s8 = inlined_call_operand.vmem [shape: f32[1,128], index: 8, kind: input, shape index: {}]
  %s9 = inlined_call_operand.vmem [shape: f32[16,128], index: 9, kind: output, shape index: {}]
  %s10 = sld [smem:[#allocation0]]
  $region46: #{actor_forward.1} parent=0
    _
  %s12 = ssub.s32 1, %s10
  %s13 = scalar_select 0, %s12, %s10
  // Predicated region
  $region2: #{actor_forward.1} parent=0 // pred_check
    _
  $region3: #{actor_forward.1} parent=0 // pred_check_branch
    %15 = sbr.rel (0) target = $region5
  $region4: #{actor_forward.1} parent=0 // pred_region
    _
  $region5: #{actor_forward.1} parent=0 // pred_fallthru
    _
  // Predicated region
  $region6: #{actor_forward.1} parent=0 // pred_check
    _
  $region7: #{actor_forward.1} parent=0 // pred_check_branch
    %17 = sbr.rel (0) target = $region9
  $region8: #{actor_forward.1} parent=0 // pred_region
    _
  $region9: #{actor_forward.1} parent=0 // pred_fallthru
    _
  // Predicated region
  $region10: #{actor_forward.1} parent=0 // pred_check
    _
  $region11: #{actor_forward.1} parent=0 // pred_check_branch
    %19 = sbr.rel (0) target = $region13
  $region12: #{actor_forward.1} parent=0 // pred_region
    _
  $region13: #{actor_forward.1} parent=0 // pred_fallthru
    _
  // Predicated region
  $region14: #{actor_forward.1} parent=0 // pred_check
    _
  $region15: #{actor_forward.1} parent=0 // pred_check_branch
    %21 = sbr.rel (0) target = $region17
  $region16: #{actor_forward.1} parent=0 // pred_region
    _
  $region17: #{actor_forward.1} parent=0 // pred_fallthru
    _
  // Predicated region
  $region18: #{actor_forward.1} parent=0 // pred_check
    _
  $region19: #{actor_forward.1} parent=0 // pred_check_branch
    %23 = sbr.rel (0) target = $region21
  $region20: #{actor_forward.1} parent=0 // pred_region
    _
  $region21: #{actor_forward.1} parent=0 // pred_fallthru
    _
  // Predicated region
  $region22: #{actor_forward.1} parent=0 // pred_check
    _
  $region23: #{actor_forward.1} parent=0 // pred_check_branch
    %25 = sbr.rel (0) target = $region25
  $region24: #{actor_forward.1} parent=0 // pred_region
    _
  $region25: #{actor_forward.1} parent=0 // pred_fallthru
    _
  // Predicated region
  $region26: #{actor_forward.1} parent=0 // pred_check
    _
  $region27: #{actor_forward.1} parent=0 // pred_check_branch
    %27 = sbr.rel (0) target = $region29
  $region28: #{actor_forward.1} parent=0 // pred_region
    _
  $region29: #{actor_forward.1} parent=0 // pred_fallthru
    _
  // Predicated region
  $region30: #{actor_forward.1} parent=0 // pred_check
    _
  $region31: #{actor_forward.1} parent=0 // pred_check_branch
    %29 = sbr.rel (0) target = $region33
  $region32: #{actor_forward.1} parent=0 // pred_region
    _
  $region33: #{actor_forward.1} parent=0 // pred_fallthru
    _
  // Predicated region
  $region34: #{actor_forward.1} parent=0 // pred_check
    _
  $region35: #{actor_forward.1} parent=0 // pred_check_branch
    %31 = sbr.rel (0) target = $region37
  $region36: #{actor_forward.1} parent=0 // pred_region
    _
  $region37: #{actor_forward.1} parent=0 // pred_fallthru
    _
  %v33 = vld [vmem:[%s0] sm:$0xf]
  %v34 = vld [vmem:[%s0 + $0x4] sm:$0xf]
  %v35 = vld [vmem:[%s1] sm:$0xff]
  %v36 = vld [vmem:[%s1 + $0x8] sm:$0xff]
  %v37 = vld [vmem:[%s2] sm:$0x3]
  %v39 = vperm.slane %v37, 0
  %v40 = vperm.slane %v37, 1
  %v45 = vunpack.c.l.b16 %v33
  %v46 = vunpack.c.l.b16 %v34
  %v47 = vpack.c.b16 %v46, %v45
  %v50 = vunpack.c.l.b16 %v35
  %v51 = vunpack.c.h.b16 %v35
  %v52 = vunpack.c.l.b16 %v36
  %v53 = vunpack.c.h.b16 %v36
  %v54 = vpack.c.b16 %v52, %v50
  %v55 = vpack.c.b16 %v53, %v51
  %vm58 = vcmask 130048
  %v60 = vsel %vm58, %v47, 0
  %62 = vmatpush.bf16.msra.mxu0 0
  %63 = vmatpush.bf16.msra.mxu0 0
  %64 = vmatpush.bf16.msra.mxu0 0
  %65 = vmatpush.bf16.msra.mxu0 0
  %66 = vmatpush.bf16.msra.mxu0 0
  %67 = vmatpush.bf16.msra.mxu0 0
  %68 = vmatpush.bf16.msra.mxu0 0
  %69 = vmatpush.bf16.msra.mxu0 %v54
  %70 = vmatmul.bf16.gmra.mxu0 %v60
  %v71 = vpop.f32.mrf.mxu0
  %v72 = vadd.f32 %v39, %v71
  %v73 = vpop.f32.mrf.mxu0
  %v74 = vadd.f32 %v39, %v73
  %75 = vdwg.mxu0
  %76 = vmatpush.bf16.msra.mxu0 0
  %77 = vmatpush.bf16.msra.mxu0 0
  %78 = vmatpush.bf16.msra.mxu0 0
  %79 = vmatpush.bf16.msra.mxu0 0
  %80 = vmatpush.bf16.msra.mxu0 0
  %81 = vmatpush.bf16.msra.mxu0 0
  %82 = vmatpush.bf16.msra.mxu0 0
  %83 = vmatpush.bf16.msra.mxu0 %v55
  %84 = vmatmul.bf16.gmra.mxu0 %v60
  %v85 = vpop.f32.mrf.mxu0
  %v86 = vadd.f32 %v40, %v85
  %v87 = vpop.f32.mrf.mxu0
  %v88 = vadd.f32 %v40, %v87
  %89 = vdwg.mxu0
  %v90 = vmax.f32 %v72, 0.0
  %v91 = vmax.f32 %v86, 0.0
  %v92 = vmax.f32 %v74, 0.0
  %v93 = vmax.f32 %v88, 0.0
  %v94 = vpack.c.bf16 %v92, %v90
  %v95 = vpack.c.bf16 %v93, %v91
  %v96 = vld [vmem:[%s3] sm:$0xff]
  %v97 = vld [vmem:[%s3 + $0x8] sm:$0xff]
  %v98 = vld [vmem:[%s3 + $0x10] sm:$0xff]
  %v99 = vld [vmem:[%s3 + $0x18] sm:$0xff]
  %v100 = vld [vmem:[%s3 + $0x20] sm:$0xff]
  %v101 = vld [vmem:[%s3 + $0x28] sm:$0xff]
  %v102 = vld [vmem:[%s3 + $0x30] sm:$0xff]
  %v103 = vld [vmem:[%s3 + $0x38] sm:$0xff]
  %v104 = vld [vmem:[%s3 + $0x40] sm:$0xff]
  %v105 = vld [vmem:[%s3 + $0x48] sm:$0xff]
  %v106 = vld [vmem:[%s3 + $0x50] sm:$0xff]
  %v107 = vld [vmem:[%s3 + $0x58] sm:$0xff]
  %v108 = vld [vmem:[%s3 + $0x60] sm:$0xff]
  %v109 = vld [vmem:[%s3 + $0x68] sm:$0xff]
  %v110 = vld [vmem:[%s3 + $0x70] sm:$0xff]
  %v111 = vld [vmem:[%s3 + $0x78] sm:$0xff]
  %v112 = vld [vmem:[%s3 + $0x80] sm:$0xff]
  %v113 = vld [vmem:[%s3 + $0x88] sm:$0xff]
  %v114 = vld [vmem:[%s3 + $0x90] sm:$0xff]
  %v115 = vld [vmem:[%s3 + $0x98] sm:$0xff]
  %v116 = vld [vmem:[%s3 + $0xa0] sm:$0xff]
  %v117 = vld [vmem:[%s3 + $0xa8] sm:$0xff]
  %v118 = vld [vmem:[%s3 + $0xb0] sm:$0xff]
  %v119 = vld [vmem:[%s3 + $0xb8] sm:$0xff]
  %v120 = vld [vmem:[%s3 + $0xc0] sm:$0xff]
  %v121 = vld [vmem:[%s3 + $0xc8] sm:$0xff]
  %v122 = vld [vmem:[%s3 + $0xd0] sm:$0xff]
  %v123 = vld [vmem:[%s3 + $0xd8] sm:$0xff]
  %v124 = vld [vmem:[%s3 + $0xe0] sm:$0xff]
  %v125 = vld [vmem:[%s3 + $0xe8] sm:$0xff]
  %v126 = vld [vmem:[%s3 + $0xf0] sm:$0xff]
  %v127 = vld [vmem:[%s3 + $0xf8] sm:$0xff]
  %v128 = vld [vmem:[%s4] sm:$0x3]
  %v130 = vperm.slane %v128, 0
  %v131 = vperm.slane %v128, 1
  %v166 = vunpack.c.l.b16 %v96
  %v167 = vunpack.c.h.b16 %v96
  %v168 = vunpack.c.l.b16 %v97
  %v169 = vunpack.c.h.b16 %v97
  %v170 = vunpack.c.l.b16 %v98
  %v171 = vunpack.c.h.b16 %v98
  %v172 = vunpack.c.l.b16 %v99
  %v173 = vunpack.c.h.b16 %v99
  %v174 = vunpack.c.l.b16 %v100
  %v175 = vunpack.c.h.b16 %v100
  %v176 = vunpack.c.l.b16 %v101
  %v177 = vunpack.c.h.b16 %v101
  %v178 = vunpack.c.l.b16 %v102
  %v179 = vunpack.c.h.b16 %v102
  %v180 = vunpack.c.l.b16 %v103
  %v181 = vunpack.c.h.b16 %v103
  %v182 = vunpack.c.l.b16 %v104
  %v183 = vunpack.c.h.b16 %v104
  %v184 = vunpack.c.l.b16 %v105
  %v185 = vunpack.c.h.b16 %v105
  %v186 = vunpack.c.l.b16 %v106
  %v187 = vunpack.c.h.b16 %v106
  %v188 = vunpack.c.l.b16 %v107
  %v189 = vunpack.c.h.b16 %v107
  %v190 = vunpack.c.l.b16 %v108
  %v191 = vunpack.c.h.b16 %v108
  %v192 = vunpack.c.l.b16 %v109
  %v193 = vunpack.c.h.b16 %v109
  %v194 = vunpack.c.l.b16 %v110
  %v195 = vunpack.c.h.b16 %v110
  %v196 = vunpack.c.l.b16 %v111
  %v197 = vunpack.c.h.b16 %v111
  %v198 = vunpack.c.l.b16 %v112
  %v199 = vunpack.c.h.b16 %v112
  %v200 = vunpack.c.l.b16 %v113
  %v201 = vunpack.c.h.b16 %v113
  %v202 = vunpack.c.l.b16 %v114
  %v203 = vunpack.c.h.b16 %v114
  %v204 = vunpack.c.l.b16 %v115
  %v205 = vunpack.c.h.b16 %v115
  %v206 = vunpack.c.l.b16 %v116
  %v207 = vunpack.c.h.b16 %v116
  %v208 = vunpack.c.l.b16 %v117
  %v209 = vunpack.c.h.b16 %v117
  %v210 = vunpack.c.l.b16 %v118
  %v211 = vunpack.c.h.b16 %v118
  %v212 = vunpack.c.l.b16 %v119
  %v213 = vunpack.c.h.b16 %v119
  %v214 = vunpack.c.l.b16 %v120
  %v215 = vunpack.c.h.b16 %v120
  %v216 = vunpack.c.l.b16 %v121
  %v217 = vunpack.c.h.b16 %v121
  %v218 = vunpack.c.l.b16 %v122
  %v219 = vunpack.c.h.b16 %v122
  %v220 = vunpack.c.l.b16 %v123
  %v221 = vunpack.c.h.b16 %v123
  %v222 = vunpack.c.l.b16 %v124
  %v223 = vunpack.c.h.b16 %v124
  %v224 = vunpack.c.l.b16 %v125
  %v225 = vunpack.c.h.b16 %v125
  %v226 = vunpack.c.l.b16 %v126
  %v227 = vunpack.c.h.b16 %v126
  %v228 = vunpack.c.l.b16 %v127
  %v229 = vunpack.c.h.b16 %v127
  %v230 = vpack.c.b16 %v168, %v166
  %v231 = vpack.c.b16 %v169, %v167
  %v232 = vpack.c.b16 %v172, %v170
  %v233 = vpack.c.b16 %v173, %v171
  %v234 = vpack.c.b16 %v176, %v174
  %v235 = vpack.c.b16 %v177, %v175
  %v236 = vpack.c.b16 %v180, %v178
  %v237 = vpack.c.b16 %v181, %v179
  %v238 = vpack.c.b16 %v184, %v182
  %v239 = vpack.c.b16 %v185, %v183
  %v240 = vpack.c.b16 %v188, %v186
  %v241 = vpack.c.b16 %v189, %v187
  %v242 = vpack.c.b16 %v192, %v190
  %v243 = vpack.c.b16 %v193, %v191
  %v244 = vpack.c.b16 %v196, %v194
  %v245 = vpack.c.b16 %v197, %v195
  %v246 = vpack.c.b16 %v200, %v198
  %v247 = vpack.c.b16 %v201, %v199
  %v248 = vpack.c.b16 %v204, %v202
  %v249 = vpack.c.b16 %v205, %v203
  %v250 = vpack.c.b16 %v208, %v206
  %v251 = vpack.c.b16 %v209, %v207
  %v252 = vpack.c.b16 %v212, %v210
  %v253 = vpack.c.b16 %v213, %v211
  %v254 = vpack.c.b16 %v216, %v214
  %v255 = vpack.c.b16 %v217, %v215
  %v256 = vpack.c.b16 %v220, %v218
  %v257 = vpack.c.b16 %v221, %v219
  %v258 = vpack.c.b16 %v224, %v222
  %v259 = vpack.c.b16 %v225, %v223
  %v260 = vpack.c.b16 %v228, %v226
  %v261 = vpack.c.b16 %v229, %v227
  %294 = vmatpush.bf16.msra.mxu0 %v244
  %295 = vmatpush.bf16.msra.mxu0 %v242
  %296 = vmatpush.bf16.msra.mxu0 %v240
  %297 = vmatpush.bf16.msra.mxu0 %v238
  %298 = vmatpush.bf16.msra.mxu0 %v236
  %299 = vmatpush.bf16.msra.mxu0 %v234
  %300 = vmatpush.bf16.msra.mxu0 %v232
  %301 = vmatpush.bf16.msra.mxu0 %v230
  %302 = vmatmul.bf16.gmra.mxu0 %v94
  %v303 = vpop.f32.mrf.mxu0
  %v304 = vadd.f32 %v130, %v303
  %v305 = vpop.f32.mrf.mxu0
  %v306 = vadd.f32 %v130, %v305
  %307 = vdwg.mxu0
  %308 = vmatpush.bf16.msra.mxu0 %v260
  %309 = vmatpush.bf16.msra.mxu0 %v258
  %310 = vmatpush.bf16.msra.mxu0 %v256
  %311 = vmatpush.bf16.msra.mxu0 %v254
  %312 = vmatpush.bf16.msra.mxu0 %v252
  %313 = vmatpush.bf16.msra.mxu0 %v250
  %314 = vmatpush.bf16.msra.mxu0 %v248
  %315 = vmatpush.bf16.msra.mxu0 %v246
  %316 = vmatmul.bf16.gmra.mxu0 %v95
  %v317 = vpop.f32.mrf.mxu0
  %v318 = vadd.f32 %v304, %v317
  %v319 = vpop.f32.mrf.mxu0
  %v320 = vadd.f32 %v306, %v319
  %321 = vdwg.mxu0
  %322 = vmatpush.bf16.msra.mxu0 %v245
  %323 = vmatpush.bf16.msra.mxu0 %v243
  %324 = vmatpush.bf16.msra.mxu0 %v241
  %325 = vmatpush.bf16.msra.mxu0 %v239
  %326 = vmatpush.bf16.msra.mxu0 %v237
  %327 = vmatpush.bf16.msra.mxu0 %v235
  %328 = vmatpush.bf16.msra.mxu0 %v233
  %329 = vmatpush.bf16.msra.mxu0 %v231
  %330 = vmatmul.bf16.gmra.mxu0 %v94
  %v331 = vpop.f32.mrf.mxu0
  %v332 = vadd.f32 %v131, %v331
  %v333 = vpop.f32.mrf.mxu0
  %v334 = vadd.f32 %v131, %v333
  %335 = vdwg.mxu0
  %336 = vmatpush.bf16.msra.mxu0 %v261
  %337 = vmatpush.bf16.msra.mxu0 %v259
  %338 = vmatpush.bf16.msra.mxu0 %v257
  %339 = vmatpush.bf16.msra.mxu0 %v255
  %340 = vmatpush.bf16.msra.mxu0 %v253
  %341 = vmatpush.bf16.msra.mxu0 %v251
  %342 = vmatpush.bf16.msra.mxu0 %v249
  %343 = vmatpush.bf16.msra.mxu0 %v247
  %344 = vmatmul.bf16.gmra.mxu0 %v95
  %v345 = vpop.f32.mrf.mxu0
  %v346 = vadd.f32 %v332, %v345
  %v347 = vpop.f32.mrf.mxu0
  %v348 = vadd.f32 %v334, %v347
  %349 = vdwg.mxu0
  %v350 = vmax.f32 %v318, 0.0
  %v351 = vmax.f32 %v346, 0.0
  %v352 = vmax.f32 %v320, 0.0
  %v353 = vmax.f32 %v348, 0.0
  %v354 = vpack.c.bf16 %v352, %v350
  %v355 = vpack.c.bf16 %v353, %v351
  %v356 = vld [vmem:[%s5] sm:$0xff]
  %v357 = vld [vmem:[%s5 + $0x8] sm:$0xff]
  %v358 = vld [vmem:[%s5 + $0x10] sm:$0xff]
  %v359 = vld [vmem:[%s5 + $0x18] sm:$0xff]
  %v360 = vld [vmem:[%s5 + $0x20] sm:$0xff]
  %v361 = vld [vmem:[%s5 + $0x28] sm:$0xff]
  %v362 = vld [vmem:[%s5 + $0x30] sm:$0xff]
  %v363 = vld [vmem:[%s5 + $0x38] sm:$0xff]
  %v364 = vld [vmem:[%s5 + $0x40] sm:$0xff]
  %v365 = vld [vmem:[%s5 + $0x48] sm:$0xff]
  %v366 = vld [vmem:[%s5 + $0x50] sm:$0xff]
  %v367 = vld [vmem:[%s5 + $0x58] sm:$0xff]
  %v368 = vld [vmem:[%s5 + $0x60] sm:$0xff]
  %v369 = vld [vmem:[%s5 + $0x68] sm:$0xff]
  %v370 = vld [vmem:[%s5 + $0x70] sm:$0xff]
  %v371 = vld [vmem:[%s5 + $0x78] sm:$0xff]
  %v372 = vld [vmem:[%s5 + $0x80] sm:$0xff]
  %v373 = vld [vmem:[%s5 + $0x88] sm:$0xff]
  %v374 = vld [vmem:[%s5 + $0x90] sm:$0xff]
  %v375 = vld [vmem:[%s5 + $0x98] sm:$0xff]
  %v376 = vld [vmem:[%s5 + $0xa0] sm:$0xff]
  %v377 = vld [vmem:[%s5 + $0xa8] sm:$0xff]
  %v378 = vld [vmem:[%s5 + $0xb0] sm:$0xff]
  %v379 = vld [vmem:[%s5 + $0xb8] sm:$0xff]
  %v380 = vld [vmem:[%s5 + $0xc0] sm:$0xff]
  %v381 = vld [vmem:[%s5 + $0xc8] sm:$0xff]
  %v382 = vld [vmem:[%s5 + $0xd0] sm:$0xff]
  %v383 = vld [vmem:[%s5 + $0xd8] sm:$0xff]
  %v384 = vld [vmem:[%s5 + $0xe0] sm:$0xff]
  %v385 = vld [vmem:[%s5 + $0xe8] sm:$0xff]
  %v386 = vld [vmem:[%s5 + $0xf0] sm:$0xff]
  %v387 = vld [vmem:[%s5 + $0xf8] sm:$0xff]
  %v388 = vld [vmem:[%s6] sm:$0x3]
  %v390 = vperm.slane %v388, 0
  %v391 = vperm.slane %v388, 1
  %v426 = vunpack.c.l.b16 %v356
  %v427 = vunpack.c.h.b16 %v356
  %v428 = vunpack.c.l.b16 %v357
  %v429 = vunpack.c.h.b16 %v357
  %v430 = vunpack.c.l.b16 %v358
  %v431 = vunpack.c.h.b16 %v358
  %v432 = vunpack.c.l.b16 %v359
  %v433 = vunpack.c.h.b16 %v359
  %v434 = vunpack.c.l.b16 %v360
  %v435 = vunpack.c.h.b16 %v360
  %v436 = vunpack.c.l.b16 %v361
  %v437 = vunpack.c.h.b16 %v361
  %v438 = vunpack.c.l.b16 %v362
  %v439 = vunpack.c.h.b16 %v362
  %v440 = vunpack.c.l.b16 %v363
  %v441 = vunpack.c.h.b16 %v363
  %v442 = vunpack.c.l.b16 %v364
  %v443 = vunpack.c.h.b16 %v364
  %v444 = vunpack.c.l.b16 %v365
  %v445 = vunpack.c.h.b16 %v365
  %v446 = vunpack.c.l.b16 %v366
  %v447 = vunpack.c.h.b16 %v366
  %v448 = vunpack.c.l.b16 %v367
  %v449 = vunpack.c.h.b16 %v367
  %v450 = vunpack.c.l.b16 %v368
  %v451 = vunpack.c.h.b16 %v368
  %v452 = vunpack.c.l.b16 %v369
  %v453 = vunpack.c.h.b16 %v369
  %v454 = vunpack.c.l.b16 %v370
  %v455 = vunpack.c.h.b16 %v370
  %v456 = vunpack.c.l.b16 %v371
  %v457 = vunpack.c.h.b16 %v371
  %v458 = vunpack.c.l.b16 %v372
  %v459 = vunpack.c.h.b16 %v372
  %v460 = vunpack.c.l.b16 %v373
  %v461 = vunpack.c.h.b16 %v373
  %v462 = vunpack.c.l.b16 %v374
  %v463 = vunpack.c.h.b16 %v374
  %v464 = vunpack.c.l.b16 %v375
  %v465 = vunpack.c.h.b16 %v375
  %v466 = vunpack.c.l.b16 %v376
  %v467 = vunpack.c.h.b16 %v376
  %v468 = vunpack.c.l.b16 %v377
  %v469 = vunpack.c.h.b16 %v377
  %v470 = vunpack.c.l.b16 %v378
  %v471 = vunpack.c.h.b16 %v378
  %v472 = vunpack.c.l.b16 %v379
  %v473 = vunpack.c.h.b16 %v379
  %v474 = vunpack.c.l.b16 %v380
  %v475 = vunpack.c.h.b16 %v380
  %v476 = vunpack.c.l.b16 %v381
  %v477 = vunpack.c.h.b16 %v381
  %v478 = vunpack.c.l.b16 %v382
  %v479 = vunpack.c.h.b16 %v382
  %v480 = vunpack.c.l.b16 %v383
  %v481 = vunpack.c.h.b16 %v383
  %v482 = vunpack.c.l.b16 %v384
  %v483 = vunpack.c.h.b16 %v384
  %v484 = vunpack.c.l.b16 %v385
  %v485 = vunpack.c.h.b16 %v385
  %v486 = vunpack.c.l.b16 %v386
  %v487 = vunpack.c.h.b16 %v386
  %v488 = vunpack.c.l.b16 %v387
  %v489 = vunpack.c.h.b16 %v387
  %v490 = vpack.c.b16 %v428, %v426
  %v491 = vpack.c.b16 %v429, %v427
  %v492 = vpack.c.b16 %v432, %v430
  %v493 = vpack.c.b16 %v433, %v431
  %v494 = vpack.c.b16 %v436, %v434
  %v495 = vpack.c.b16 %v437, %v435
  %v496 = vpack.c.b16 %v440, %v438
  %v497 = vpack.c.b16 %v441, %v439
  %v498 = vpack.c.b16 %v444, %v442
  %v499 = vpack.c.b16 %v445, %v443
  %v500 = vpack.c.b16 %v448, %v446
  %v501 = vpack.c.b16 %v449, %v447
  %v502 = vpack.c.b16 %v452, %v450
  %v503 = vpack.c.b16 %v453, %v451
  %v504 = vpack.c.b16 %v456, %v454
  %v505 = vpack.c.b16 %v457, %v455
  %v506 = vpack.c.b16 %v460, %v458
  %v507 = vpack.c.b16 %v461, %v459
  %v508 = vpack.c.b16 %v464, %v462
  %v509 = vpack.c.b16 %v465, %v463
  %v510 = vpack.c.b16 %v468, %v466
  %v511 = vpack.c.b16 %v469, %v467
  %v512 = vpack.c.b16 %v472, %v470
  %v513 = vpack.c.b16 %v473, %v471
  %v514 = vpack.c.b16 %v476, %v474
  %v515 = vpack.c.b16 %v477, %v475
  %v516 = vpack.c.b16 %v480, %v478
  %v517 = vpack.c.b16 %v481, %v479
  %v518 = vpack.c.b16 %v484, %v482
  %v519 = vpack.c.b16 %v485, %v483
  %v520 = vpack.c.b16 %v488, %v486
  %v521 = vpack.c.b16 %v489, %v487
  %554 = vmatpush.bf16.msra.mxu0 %v504
  %555 = vmatpush.bf16.msra.mxu0 %v502
  %556 = vmatpush.bf16.msra.mxu0 %v500
  %557 = vmatpush.bf16.msra.mxu0 %v498
  %558 = vmatpush.bf16.msra.mxu0 %v496
  %559 = vmatpush.bf16.msra.mxu0 %v494
  %560 = vmatpush.bf16.msra.mxu0 %v492
  %561 = vmatpush.bf16.msra.mxu0 %v490
  %562 = vmatmul.bf16.gmra.mxu0 %v354
  %v563 = vpop.f32.mrf.mxu0
  %v564 = vadd.f32 %v390, %v563
  %v565 = vpop.f32.mrf.mxu0
  %v566 = vadd.f32 %v390, %v565
  %567 = vdwg.mxu0
  %568 = vmatpush.bf16.msra.mxu0 %v520
  %569 = vmatpush.bf16.msra.mxu0 %v518
  %570 = vmatpush.bf16.msra.mxu0 %v516
  %571 = vmatpush.bf16.msra.mxu0 %v514
  %572 = vmatpush.bf16.msra.mxu0 %v512
  %573 = vmatpush.bf16.msra.mxu0 %v510
  %574 = vmatpush.bf16.msra.mxu0 %v508
  %575 = vmatpush.bf16.msra.mxu0 %v506
  %576 = vmatmul.bf16.gmra.mxu0 %v355
  %v577 = vpop.f32.mrf.mxu0
  %v578 = vadd.f32 %v564, %v577
  %v579 = vpop.f32.mrf.mxu0
  %v580 = vadd.f32 %v566, %v579
  %581 = vdwg.mxu0
  %582 = vmatpush.bf16.msra.mxu0 %v505
  %583 = vmatpush.bf16.msra.mxu0 %v503
  %584 = vmatpush.bf16.msra.mxu0 %v501
  %585 = vmatpush.bf16.msra.mxu0 %v499
  %586 = vmatpush.bf16.msra.mxu0 %v497
  %587 = vmatpush.bf16.msra.mxu0 %v495
  %588 = vmatpush.bf16.msra.mxu0 %v493
  %589 = vmatpush.bf16.msra.mxu0 %v491
  %590 = vmatmul.bf16.gmra.mxu0 %v354
  %v591 = vpop.f32.mrf.mxu0
  %v592 = vadd.f32 %v391, %v591
  %v593 = vpop.f32.mrf.mxu0
  %v594 = vadd.f32 %v391, %v593
  %595 = vdwg.mxu0
  %596 = vmatpush.bf16.msra.mxu0 %v521
  %597 = vmatpush.bf16.msra.mxu0 %v519
  %598 = vmatpush.bf16.msra.mxu0 %v517
  %599 = vmatpush.bf16.msra.mxu0 %v515
  %600 = vmatpush.bf16.msra.mxu0 %v513
  %601 = vmatpush.bf16.msra.mxu0 %v511
  %602 = vmatpush.bf16.msra.mxu0 %v509
  %603 = vmatpush.bf16.msra.mxu0 %v507
  %604 = vmatmul.bf16.gmra.mxu0 %v355
  %v605 = vpop.f32.mrf.mxu0
  %v606 = vadd.f32 %v592, %v605
  %v607 = vpop.f32.mrf.mxu0
  %v608 = vadd.f32 %v594, %v607
  %609 = vdwg.mxu0
  %v610 = vmax.f32 %v578, 0.0
  %v611 = vmax.f32 %v606, 0.0
  %v612 = vmax.f32 %v580, 0.0
  %v613 = vmax.f32 %v608, 0.0
  %v614 = vpack.c.bf16 %v612, %v610
  %v615 = vpack.c.bf16 %v613, %v611
  %v616 = vld [vmem:[%s7] sm:$0xf]
  %v617 = vld [vmem:[%s7 + $0x4] sm:$0xf]
  %v618 = vld [vmem:[%s7 + $0x8] sm:$0xf]
  %v619 = vld [vmem:[%s7 + $0xc] sm:$0xf]
  %v620 = vld [vmem:[%s7 + $0x10] sm:$0xf]
  %v621 = vld [vmem:[%s7 + $0x14] sm:$0xf]
  %v622 = vld [vmem:[%s7 + $0x18] sm:$0xf]
  %v623 = vld [vmem:[%s7 + $0x1c] sm:$0xf]
  %v624 = vld [vmem:[%s7 + $0x20] sm:$0xf]
  %v625 = vld [vmem:[%s7 + $0x24] sm:$0xf]
  %v626 = vld [vmem:[%s7 + $0x28] sm:$0xf]
  %v627 = vld [vmem:[%s7 + $0x2c] sm:$0xf]
  %v628 = vld [vmem:[%s7 + $0x30] sm:$0xf]
  %v629 = vld [vmem:[%s7 + $0x34] sm:$0xf]
  %v630 = vld [vmem:[%s7 + $0x38] sm:$0xf]
  %v631 = vld [vmem:[%s7 + $0x3c] sm:$0xf]
  %v632 = vld [vmem:[%s7 + $0x40] sm:$0xf]
  %v633 = vld [vmem:[%s7 + $0x44] sm:$0xf]
  %v634 = vld [vmem:[%s7 + $0x48] sm:$0xf]
  %v635 = vld [vmem:[%s7 + $0x4c] sm:$0xf]
  %v636 = vld [vmem:[%s7 + $0x50] sm:$0xf]
  %v637 = vld [vmem:[%s7 + $0x54] sm:$0xf]
  %v638 = vld [vmem:[%s7 + $0x58] sm:$0xf]
  %v639 = vld [vmem:[%s7 + $0x5c] sm:$0xf]
  %v640 = vld [vmem:[%s7 + $0x60] sm:$0xf]
  %v641 = vld [vmem:[%s7 + $0x64] sm:$0xf]
  %v642 = vld [vmem:[%s7 + $0x68] sm:$0xf]
  %v643 = vld [vmem:[%s7 + $0x6c] sm:$0xf]
  %v644 = vld [vmem:[%s7 + $0x70] sm:$0xf]
  %v645 = vld [vmem:[%s7 + $0x74] sm:$0xf]
  %v646 = vld [vmem:[%s7 + $0x78] sm:$0xf]
  %v647 = vld [vmem:[%s7 + $0x7c] sm:$0xf]
  %v648 = vld [vmem:[%s8] sm:$0x1]
  %v650 = vperm.slane %v648, 0
  %v684 = vunpack.c.l.b16 %v616
  %v685 = vunpack.c.l.b16 %v617
  %v686 = vunpack.c.l.b16 %v618
  %v687 = vunpack.c.l.b16 %v619
  %v688 = vunpack.c.l.b16 %v620
  %v689 = vunpack.c.l.b16 %v621
  %v690 = vunpack.c.l.b16 %v622
  %v691 = vunpack.c.l.b16 %v623
  %v692 = vunpack.c.l.b16 %v624
  %v693 = vunpack.c.l.b16 %v625
  %v694 = vunpack.c.l.b16 %v626
  %v695 = vunpack.c.l.b16 %v627
  %v696 = vunpack.c.l.b16 %v628
  %v697 = vunpack.c.l.b16 %v629
  %v698 = vunpack.c.l.b16 %v630
  %v699 = vunpack.c.l.b16 %v631
  %v700 = vunpack.c.l.b16 %v632
  %v701 = vunpack.c.l.b16 %v633
  %v702 = vunpack.c.l.b16 %v634
  %v703 = vunpack.c.l.b16 %v635
  %v704 = vunpack.c.l.b16 %v636
  %v705 = vunpack.c.l.b16 %v637
  %v706 = vunpack.c.l.b16 %v638
  %v707 = vunpack.c.l.b16 %v639
  %v708 = vunpack.c.l.b16 %v640
  %v709 = vunpack.c.l.b16 %v641
  %v710 = vunpack.c.l.b16 %v642
  %v711 = vunpack.c.l.b16 %v643
  %v712 = vunpack.c.l.b16 %v644
  %v713 = vunpack.c.l.b16 %v645
  %v714 = vunpack.c.l.b16 %v646
  %v715 = vunpack.c.l.b16 %v647
  %v716 = vpack.c.b16 %v685, %v684
  %v717 = vpack.c.b16 %v687, %v686
  %v718 = vpack.c.b16 %v689, %v688
  %v719 = vpack.c.b16 %v691, %v690
  %v720 = vpack.c.b16 %v693, %v692
  %v721 = vpack.c.b16 %v695, %v694
  %v722 = vpack.c.b16 %v697, %v696
  %v723 = vpack.c.b16 %v699, %v698
  %v724 = vpack.c.b16 %v701, %v700
  %v725 = vpack.c.b16 %v703, %v702
  %v726 = vpack.c.b16 %v705, %v704
  %v727 = vpack.c.b16 %v707, %v706
  %v728 = vpack.c.b16 %v709, %v708
  %v729 = vpack.c.b16 %v711, %v710
  %v730 = vpack.c.b16 %v713, %v712
  %v731 = vpack.c.b16 %v715, %v714
  %748 = vmatpush.bf16.msra.mxu0 %v723
  %749 = vmatpush.bf16.msra.mxu0 %v722
  %750 = vmatpush.bf16.msra.mxu0 %v721
  %751 = vmatpush.bf16.msra.mxu0 %v720
  %752 = vmatpush.bf16.msra.mxu0 %v719
  %753 = vmatpush.bf16.msra.mxu0 %v718
  %754 = vmatpush.bf16.msra.mxu0 %v717
  %755 = vmatpush.bf16.msra.mxu0 %v716
  %756 = vmatmul.bf16.gmra.mxu0 %v614
  %v757 = vpop.f32.mrf.mxu0
  %v758 = vadd.f32 %v650, %v757
  %v759 = vpop.f32.mrf.mxu0
  %v760 = vadd.f32 %v650, %v759
  %761 = vdwg.mxu0
  %762 = vmatpush.bf16.msra.mxu0 %v731
  %763 = vmatpush.bf16.msra.mxu0 %v730
  %764 = vmatpush.bf16.msra.mxu0 %v729
  %765 = vmatpush.bf16.msra.mxu0 %v728
  %766 = vmatpush.bf16.msra.mxu0 %v727
  %767 = vmatpush.bf16.msra.mxu0 %v726
  %768 = vmatpush.bf16.msra.mxu0 %v725
  %769 = vmatpush.bf16.msra.mxu0 %v724
  %770 = vmatmul.bf16.gmra.mxu0 %v615
  %v771 = vpop.f32.mrf.mxu0
  %v772 = vadd.f32 %v758, %v771
  %v773 = vpop.f32.mrf.mxu0
  %v774 = vadd.f32 %v760, %v773
  %775 = vdwg.mxu0
  %776 = vst [vmem:[%s9] sm:$0xff] %v772
  %777 = vst [vmem:[%s9 + $0x8] sm:$0xff] %v774
  // Predicated region
  $region38: #{actor_forward.1} parent=0 // pred_check
    _
  $region39: #{actor_forward.1} parent=0 // pred_check_branch
    %779 = sbr.rel (0) target = $region41
  $region40: #{actor_forward.1} parent=0 // pred_region
    _
  $region41: #{actor_forward.1} parent=0 // pred_fallthru
    _
  // Predicated region
  $region42: #{actor_forward.1} parent=0 // pred_check
    _
  $region43: #{actor_forward.1} parent=0 // pred_check_branch
    %781 = sbr.rel (0) target = $region45
  $region44: #{actor_forward.1} parent=0 // pred_region
    _
  $region45: #{actor_forward.1} parent=0 // pred_fallthru
    _

</llo_original>
